<compile_context>
chip_gen: v7x
topology: tpu7x:2x2x1
jax: 0.10.0
libtpu: 0.0.40
codegen_flags: <defaults>
</compile_context>

<pallas_src>
import jax
import jax.numpy as jnp
from jax.experimental import pallas as pl
from jax.experimental.pallas import tpu as pltpu

# Synthetic "Parameter" constants (small, consistent with the module).
NUM_OF_COLOR = 4
ROW_DIM = 8
COLUMN_DIM = 8
MAX_POSSIBLE_MOVE = ROW_DIM * (COLUMN_DIM - 1)          # 56
IN_FEATURES = NUM_OF_COLOR * ROW_DIM * COLUMN_DIM       # 256
H1, H2 = 256, 128
HEAD_PAD = 128            # fused fc3/fc4 head, zero-padded to a full lane width
MAX_BATCH_TILE = 512      # rows per grid step for large batches


def _net_kernel(x_ref,
                w1_ref, b1_ref,
                w2_ref, b2_ref,
                w34_ref, b34_ref,
                out_ref):
    x = x_ref[...]                                                        # (TB, IN)

    h1 = jnp.dot(x, w1_ref[...], preferred_element_type=jnp.float32)     # (TB, 256)
    h1 = jnp.maximum(h1 + b1_ref[...], 0.0)                               # relu(fc1), f32

    h2 = jnp.dot(h1.astype(w2_ref.dtype), w2_ref[...],
                 preferred_element_type=jnp.float32)                     # (TB, 128)
    h2 = jnp.maximum(h2 + b2_ref[...], 0.0)                               # relu(fc2), f32

    # Fused fc3/fc4 head: cols 0:55 -> policy logits, col 56 -> value, cols 57: -> 0.
    head = jnp.dot(h2.astype(w34_ref.dtype), w34_ref[...],
                   preferred_element_type=jnp.float32)                   # (TB, 128)
    head = jnp.maximum(head + b34_ref[...], 0.0)                          # relu(fc3/fc4)

    # Masked, numerically-stable softmax over the 56 policy columns only.
    col = jax.lax.broadcasted_iota(jnp.int32, head.shape, 1)
    is_pi = col < MAX_POSSIBLE_MOVE
    masked_logits = jnp.where(is_pi, head, -jnp.inf)
    m = jnp.max(masked_logits, axis=1, keepdims=True)
    e = jnp.where(is_pi, jnp.exp(head - m), 0.0)
    s = jnp.sum(e, axis=1, keepdims=True)
    probs = e * pl.reciprocal(s, approx=True)                             # EUP reciprocal

    # Lane-dense (TB, 128) store: softmax probs in cols 0:55, vs in col 56, 0 elsewhere.
    out_ref[...] = jnp.where(col == MAX_POSSIBLE_MOVE, head, probs)


def net_forward(x_nchw, params, *, use_bf16=False):
    """x_nchw: (B, NUM_OF_COLOR, ROW_DIM, COLUMN_DIM) float32 -> (pis, vs)."""
    b = x_nchw.shape[0]
    x_flat = x_nchw.reshape(b, -1).astype(jnp.float32)   # matches torch x.view(-1, ...)
    w1, b1, w2, b2, w34, b34 = params

    if use_bf16:
        # Halves HBM traffic for x (the only B-scaled array) and doubles MXU rate;
        # accumulation / bias / relu / softmax stay f32. Gate on accuracy budget.
        x_flat = x_flat.astype(jnp.bfloat16)
        w1 = w1.astype(jnp.bfloat16)
        w2 = w2.astype(jnp.bfloat16)
        w34 = w34.astype(jnp.bfloat16)

    # Batch tiling: single grid step for small B; 512-row pipelined tiles otherwise.
    if b <= MAX_BATCH_TILE:
        tb = b
        b_pad = b
    else:
        tb = MAX_BATCH_TILE
        b_pad = pl.cdiv(b, tb) * tb
        if b_pad != b:
            x_flat = jnp.pad(x_flat, ((0, b_pad - b), (0, 0)))
    grid = (b_pad // tb,)

    def resident(shape):
        # Weight/bias blocks: full array, constant block index -> DMA'd once,
        # kept VMEM-resident across all grid steps.
        return pl.BlockSpec(shape, lambda i: (0, 0))

    out = pl.pallas_call(
        _net_kernel,
        grid=grid,
        in_specs=[
            pl.BlockSpec((tb, IN_FEATURES), lambda i: (i, 0)),   # x: tiled over batch
            resident((IN_FEATURES, H1)), resident((1, H1)),
            resident((H1, H2)), resident((1, H2)),
            resident((H2, HEAD_PAD)), resident((1, HEAD_PAD)),
        ],
        out_specs=pl.BlockSpec((tb, HEAD_PAD), lambda i: (i, 0)),
        out_shape=jax.ShapeDtypeStruct((b_pad, HEAD_PAD), jnp.float32),
        compiler_params=pltpu.CompilerParams(dimension_semantics=("parallel",)),
    )(x_flat, w1, b1, w2, b2, w34, b34)

    pis = out[:b, :MAX_POSSIBLE_MOVE]
    vs = out[:b, MAX_POSSIBLE_MOVE:MAX_POSSIBLE_MOVE + 1]
    return pis, vs


def init_params(key):
    """Deterministic synthetic init; weights stored as (in, out); fc3/fc4 fused."""
    ks = jax.random.split(key, 8)

    def lin(kw, kb, fan_in, fan_out):
        bound = 1.0 / jnp.sqrt(jnp.float32(fan_in))
        w = jax.random.uniform(kw, (fan_in, fan_out), jnp.float32, -bound, bound)
        bias = jax.random.uniform(kb, (1, fan_out), jnp.float32, -bound, bound)
        return w, bias

    w1, b1 = lin(ks[0], ks[1], IN_FEATURES, H1)
    w2, b2 = lin(ks[2], ks[3], H1, H2)
    w3, b3 = lin(ks[4], ks[5], H2, MAX_POSSIBLE_MOVE)
    w4, b4 = lin(ks[6], ks[7], H2, 1)

    # Fuse fc3 and fc4 into one lane-dense head, zero-padded to 128 columns.
    w34 = jnp.zeros((H2, HEAD_PAD), jnp.float32)
    w34 = w34.at[:, :MAX_POSSIBLE_MOVE].set(w3).at[:, MAX_POSSIBLE_MOVE].set(w4[:, 0])
    b34 = jnp.zeros((1, HEAD_PAD), jnp.float32)
    b34 = b34.at[:, :MAX_POSSIBLE_MOVE].set(b3).at[:, MAX_POSSIBLE_MOVE].set(b4[0, 0])
    return (w1, b1, w2, b2, w34, b34)


def _reference(x_nchw, params):
    w1, b1, w2, b2, w34, b34 = params
    w3 = w34[:, :MAX_POSSIBLE_MOVE]
    b3 = b34[:, :MAX_POSSIBLE_MOVE]
    w4 = w34[:, MAX_POSSIBLE_MOVE:MAX_POSSIBLE_MOVE + 1]
    b4 = b34[:, MAX_POSSIBLE_MOVE:MAX_POSSIBLE_MOVE + 1]
    x = x_nchw.reshape(x_nchw.shape[0], -1)
    h1 = jax.nn.relu(x @ w1 + b1)
    h2 = jax.nn.relu(h1 @ w2 + b2)
    pis = jax.nn.relu(h2 @ w3 + b3)
    vs = jax.nn.relu(h2 @ w4 + b4)
    return jax.nn.softmax(pis, axis=1), vs


if __name__ == "__main__":
    key = jax.random.PRNGKey(0)
    k_x, k_p = jax.random.split(key)

    batch = 2
    x = jax.random.normal(k_x, (batch, NUM_OF_COLOR, ROW_DIM, COLUMN_DIM), jnp.float32)
    params = init_params(k_p)

    pis, vs = jax.block_until_ready(net_forward(x, params))

    # Sanity check against a pure-JAX reference.
    ref_pis, ref_vs = _reference(x, params)
    assert pis.shape == (batch, MAX_POSSIBLE_MOVE) and vs.shape == (batch, 1)
    # pis tolerance loosened slightly for the approx EUP reciprocal in the softmax.
    assert jnp.allclose(pis, ref_pis, atol=2e-3, rtol=2e-3)
    assert jnp.allclose(vs, ref_vs, atol=1e-5, rtol=1e-5)

    print("KERNEL_OK")
</pallas_src>

<mosaic_0001>
module attributes {stable_mosaic.version = 11 : i64} {
  func.func @_net_kernel(%arg0: i32, %arg1: memref<2x256xf32, #tpu.memory_space<vmem>>, %arg2: memref<256x256xf32, #tpu.memory_space<vmem>>, %arg3: memref<1x256xf32, #tpu.memory_space<vmem>>, %arg4: memref<256x128xf32, #tpu.memory_space<vmem>>, %arg5: memref<1x128xf32, #tpu.memory_space<vmem>>, %arg6: memref<128x128xf32, #tpu.memory_space<vmem>>, %arg7: memref<1x128xf32, #tpu.memory_space<vmem>>, %arg8: memref<2x128xf32, #tpu.memory_space<vmem>>) attributes {dimension_semantics = [#tpu.dimension_semantics<parallel>], iteration_bounds = array<i64: 1>, scalar_prefetch = 0 : i64, scratch_operands = 0 : i64, tpu.core_type = #tpu.core_type<tc>, window_params = [{transform_indices = @transform_0, window_bounds = array<i64: 2, 256>}, {pipeline_mode = #tpu.pipeline_mode<synchronous>, transform_indices = @transform_1, window_bounds = array<i64: 256, 256>}, {pipeline_mode = #tpu.pipeline_mode<synchronous>, transform_indices = @transform_2, window_bounds = array<i64: 1, 256>}, {pipeline_mode = #tpu.pipeline_mode<synchronous>, transform_indices = @transform_3, window_bounds = array<i64: 256, 128>}, {pipeline_mode = #tpu.pipeline_mode<synchronous>, transform_indices = @transform_4, window_bounds = array<i64: 1, 128>}, {pipeline_mode = #tpu.pipeline_mode<synchronous>, transform_indices = @transform_5, window_bounds = array<i64: 128, 128>}, {pipeline_mode = #tpu.pipeline_mode<synchronous>, transform_indices = @transform_6, window_bounds = array<i64: 1, 128>}, {transform_indices = @transform_7, window_bounds = array<i64: 2, 128>}]} {
    %c0 = arith.constant 0 : index
    %c0_0 = arith.constant 0 : index
    %0 = vector.load %arg1[%c0, %c0_0] : memref<2x256xf32, #tpu.memory_space<vmem>>, vector<2x256xf32>
    %c0_1 = arith.constant 0 : index
    %c0_2 = arith.constant 0 : index
    %1 = vector.load %arg2[%c0_1, %c0_2] : memref<256x256xf32, #tpu.memory_space<vmem>>, vector<256x256xf32>
    %cst = arith.constant dense<0.000000e+00> : vector<2x256xf32>
    %2 = tpu.matmul %0, %1, %cst {dimension_numbers = #tpu.dot_dimension_numbers<[1], [0], [0], [1], [0, 0, 1, 1], [], []>} : vector<2x256xf32>, vector<256x256xf32>, vector<2x256xf32> -> vector<2x256xf32>
    %c0_3 = arith.constant 0 : index
    %c0_4 = arith.constant 0 : index
    %3 = vector.load %arg3[%c0_3, %c0_4] : memref<1x256xf32, #tpu.memory_space<vmem>>, vector<1x256xf32>
    %4 = vector.broadcast %3 : vector<1x256xf32> to vector<2x256xf32>
    %5 = arith.addf %2, %4 : vector<2x256xf32>
    %cst_5 = arith.constant 0.000000e+00 : f32
    %6 = vector.broadcast %cst_5 : f32 to vector<2x256xf32>
    %7 = arith.maximumf %5, %6 : vector<2x256xf32>
    %c0_6 = arith.constant 0 : index
    %c0_7 = arith.constant 0 : index
    %8 = vector.load %arg4[%c0_6, %c0_7] : memref<256x128xf32, #tpu.memory_space<vmem>>, vector<256x128xf32>
    %cst_8 = arith.constant dense<0.000000e+00> : vector<2x128xf32>
    %9 = tpu.matmul %7, %8, %cst_8 {dimension_numbers = #tpu.dot_dimension_numbers<[1], [0], [0], [1], [0, 0, 1, 1], [], []>} : vector<2x256xf32>, vector<256x128xf32>, vector<2x128xf32> -> vector<2x128xf32>
    %c0_9 = arith.constant 0 : index
    %c0_10 = arith.constant 0 : index
    %10 = vector.load %arg5[%c0_9, %c0_10] : memref<1x128xf32, #tpu.memory_space<vmem>>, vector<1x128xf32>
    %11 = vector.broadcast %10 : vector<1x128xf32> to vector<2x128xf32>
    %12 = arith.addf %9, %11 : vector<2x128xf32>
    %cst_11 = arith.constant 0.000000e+00 : f32
    %13 = vector.broadcast %cst_11 : f32 to vector<2x128xf32>
    %14 = arith.maximumf %12, %13 : vector<2x128xf32>
    %c0_12 = arith.constant 0 : index
    %c0_13 = arith.constant 0 : index
    %15 = vector.load %arg6[%c0_12, %c0_13] : memref<128x128xf32, #tpu.memory_space<vmem>>, vector<128x128xf32>
    %cst_14 = arith.constant dense<0.000000e+00> : vector<2x128xf32>
    %16 = tpu.matmul %14, %15, %cst_14 {dimension_numbers = #tpu.dot_dimension_numbers<[1], [0], [0], [1], [0, 0, 1, 1], [], []>} : vector<2x128xf32>, vector<128x128xf32>, vector<2x128xf32> -> vector<2x128xf32>
    %c0_15 = arith.constant 0 : index
    %c0_16 = arith.constant 0 : index
    %17 = vector.load %arg7[%c0_15, %c0_16] : memref<1x128xf32, #tpu.memory_space<vmem>>, vector<1x128xf32>
    %18 = vector.broadcast %17 : vector<1x128xf32> to vector<2x128xf32>
    %19 = arith.addf %16, %18 : vector<2x128xf32>
    %cst_17 = arith.constant 0.000000e+00 : f32
    %20 = vector.broadcast %cst_17 : f32 to vector<2x128xf32>
    %21 = arith.maximumf %19, %20 : vector<2x128xf32>
    %22 = tpu.iota {dimensions = array<i32: 1>} : vector<2x128xi32>
    %c56_i32 = arith.constant 56 : i32
    %23 = vector.broadcast %c56_i32 : i32 to vector<2x128xi32>
    %24 = arith.cmpi slt, %22, %23 : vector<2x128xi32>
    %cst_18 = arith.constant 0xFF800000 : f32
    %25 = vector.broadcast %cst_18 : f32 to vector<2x128xf32>
    %26 = arith.select %24, %21, %25 : vector<2x128xi1>, vector<2x128xf32>
    %cst_19 = arith.constant dense<0xFF800000> : vector<2xf32>
    %27 = vector.multi_reduction <maximumf>, %26, %cst_19 [1] : vector<2x128xf32> to vector<2xf32>
    %28 = vector.shape_cast %27 : vector<2xf32> to vector<2x1xf32>
    %29 = vector.broadcast %28 : vector<2x1xf32> to vector<2x128xf32>
    %30 = arith.subf %21, %29 : vector<2x128xf32>
    %31 = math.exp %30 : vector<2x128xf32>
    %cst_20 = arith.constant 0.000000e+00 : f32
    %32 = vector.broadcast %cst_20 : f32 to vector<2x128xf32>
    %33 = arith.select %24, %31, %32 : vector<2x128xi1>, vector<2x128xf32>
    %cst_21 = arith.constant dense<0.000000e+00> : vector<2xf32>
    %34 = vector.multi_reduction <add>, %33, %cst_21 [1] : vector<2x128xf32> to vector<2xf32>
    %35 = vector.shape_cast %34 : vector<2xf32> to vector<2x1xf32>
    %36 = tpu.reciprocal %35 {approx = true} : vector<2x1xf32> -> vector<2x1xf32>
    %37 = vector.broadcast %36 : vector<2x1xf32> to vector<2x128xf32>
    %38 = arith.mulf %33, %37 : vector<2x128xf32>
    %c56_i32_22 = arith.constant 56 : i32
    %39 = vector.broadcast %c56_i32_22 : i32 to vector<2x128xi32>
    %40 = arith.cmpi eq, %22, %39 : vector<2x128xi32>
    %41 = arith.select %40, %21, %38 : vector<2x128xi1>, vector<2x128xf32>
    %c0_23 = arith.constant 0 : index
    %c0_24 = arith.constant 0 : index
    %42 = vector.load %arg8[%c0_23, %c0_24] : memref<2x128xf32, #tpu.memory_space<vmem>>, vector<2x128xf32>
    tpu.vector_store %arg8[%c0_23, %c0_24], %41 {strides = array<i32>} : memref<2x128xf32, #tpu.memory_space<vmem>>, vector<2x128xf32>,
    return
  }
  func.func @transform_0(%arg0: i32) -> (i32, i32) {
    %c0_i32 = arith.constant 0 : i32
    %c0_i32_0 = arith.constant 0 : i32
    return %arg0, %c0_i32 : i32, i32
  }
  func.func @transform_1(%arg0: i32) -> (i32, i32) {
    %c0_i32 = arith.constant 0 : i32
    %c0_i32_0 = arith.constant 0 : i32
    %c0_i32_1 = arith.constant 0 : i32
    return %c0_i32, %c0_i32_0 : i32, i32
  }
  func.func @transform_2(%arg0: i32) -> (i32, i32) {
    %c0_i32 = arith.constant 0 : i32
    %c0_i32_0 = arith.constant 0 : i32
    %c0_i32_1 = arith.constant 0 : i32
    return %c0_i32, %c0_i32_0 : i32, i32
  }
  func.func @transform_3(%arg0: i32) -> (i32, i32) {
    %c0_i32 = arith.constant 0 : i32
    %c0_i32_0 = arith.constant 0 : i32
    %c0_i32_1 = arith.constant 0 : i32
    return %c0_i32, %c0_i32_0 : i32, i32
  }
  func.func @transform_4(%arg0: i32) -> (i32, i32) {
    %c0_i32 = arith.constant 0 : i32
    %c0_i32_0 = arith.constant 0 : i32
    %c0_i32_1 = arith.constant 0 : i32
    return %c0_i32, %c0_i32_0 : i32, i32
  }
  func.func @transform_5(%arg0: i32) -> (i32, i32) {
    %c0_i32 = arith.constant 0 : i32
    %c0_i32_0 = arith.constant 0 : i32
    %c0_i32_1 = arith.constant 0 : i32
    return %c0_i32, %c0_i32_0 : i32, i32
  }
  func.func @transform_6(%arg0: i32) -> (i32, i32) {
    %c0_i32 = arith.constant 0 : i32
    %c0_i32_0 = arith.constant 0 : i32
    %c0_i32_1 = arith.constant 0 : i32
    return %c0_i32, %c0_i32_0 : i32, i32
  }
  func.func @transform_7(%arg0: i32) -> (i32, i32) {
    %c0_i32 = arith.constant 0 : i32
    %c0_i32_0 = arith.constant 0 : i32
    return %arg0, %c0_i32 : i32, i32
  }
}

</mosaic_0001>

<llo_original>
// kernel: tpu_custom_call.1
$region0: #{tpu_custom_call.1}
  #allocation0 [shape = 'u32[]', space=smem, size = 0x4, offset = 0x4, fixed_abs, tag = 'smem constant byte address 0x4 - core index']
  #allocation1 [shape = 'u32[144,128]{1,0:T(1,128)}', space=vmem, size = 0x12000, scoped, tag = 'internal scratch']
  %s0 = inlined_call_operand.hbm [shape: f32[2,256], index: 0, kind: input, shape index: {}]
  %s1 = inlined_call_operand.hbm [shape: f32[256,256], index: 1, kind: input, shape index: {}]
  %s2 = inlined_call_operand.vmem [shape: f32[1,256], index: 2, kind: input, shape index: {}]
  %s3 = inlined_call_operand.hbm [shape: f32[256,128], index: 3, kind: input, shape index: {}]
  %s4 = inlined_call_operand.vmem [shape: f32[1,128], index: 4, kind: input, shape index: {}]
  %s5 = inlined_call_operand.hbm [shape: f32[128,128], index: 5, kind: input, shape index: {}]
  %s6 = inlined_call_operand.vmem [shape: f32[1,128], index: 6, kind: input, shape index: {}]
  %s7 = inlined_call_operand.hbm [shape: f32[2,128], index: 7, kind: output, shape index: {}]
  %s8 = sld [smem:[#allocation0]]
  $region54: #{tpu_custom_call.1} parent=0
    _
  %s10 = ssub.s32 1, %s8
  %s11 = scalar_select 0, %s10, %s8
  $region1: #{tpu_custom_call.1} parent=0
    #allocation2 [shape = 'u8[2048]{0}', space=vmem, size = 0x800, scoped, tag = 'input window, operand 0, single buffered']
    #allocation3 [shape = 's32[1]{0}', space=sflag, size = 0x4, scoped, tag = 'scoped memory for tpu_custom_call.1']
    #allocation4 [shape = 's32[1]{0}', space=sflag, size = 0x4, scoped, tag = 'scoped memory for tpu_custom_call.1']
    #allocation5 [shape = 'u8[262144]{0}', space=vmem, size = 0x40000, scoped, tag = 'input window, operand 1, single buffered']
    #allocation6 [shape = 's32[1]{0}', space=sflag, size = 0x4, scoped, tag = 'scoped memory for tpu_custom_call.1']
    #allocation7 [shape = 'u8[131072]{0}', space=vmem, size = 0x20000, scoped, tag = 'input window, operand 3, single buffered']
    #allocation8 [shape = 'u8[65536]{0}', space=vmem, size = 0x10000, scoped, tag = 'input window, operand 5, single buffered']
    #allocation9 [shape = 's32[1]{0}', space=sflag, size = 0x4, scoped, tag = 'scoped memory for tpu_custom_call.1']
    #allocation10 [shape = 'u8[1024]{0}', space=vmem, size = 0x400, scoped, tag = 'output window, operand 0, single buffered']
    %12 = vsyncpa [#allocation3], 0
    %13 = vsyncpa [#allocation6], 0
    %14 = vsyncpa [#allocation9], 0
    %15 = vsyncpa [#allocation4], 0
    // Predicated region
    $region2: #{tpu_custom_call.1} parent=1 // pred_check
      _
    $region3: #{tpu_custom_call.1} parent=1 // pred_check_branch
      %17 = sbr.rel (0) target = $region5
    $region4: #{tpu_custom_call.1} parent=1 // pred_region
      %s19 = ssub.s32 64, 64
      %20 = vsyncadd [#allocation3], %s19
      %s22 = sshll.u32 [#allocation2], 4
      %s23 = int_to_ptr.vmem [resolvable:$true] %s22
      %25 = dma.hbm_to_vmem [thread:$0]  %s0, 64, %s23, [#allocation3]
    $region5: #{tpu_custom_call.1} parent=1 // pred_fallthru
      _
    // Predicated region
    $region6: #{tpu_custom_call.1} parent=1 // pred_check
      _
    $region7: #{tpu_custom_call.1} parent=1 // pred_check_branch
      %27 = sbr.rel (0) target = $region9
    $region8: #{tpu_custom_call.1} parent=1 // pred_region
      %s29 = ssub.s32 8192, 8192
      %30 = vsyncadd [#allocation6], %s29
      %s31 = sshll.u32 [#allocation5], 4
      %s32 = int_to_ptr.vmem [resolvable:$true] %s31
      %37 = dma.hbm_to_vmem [thread:$0]  %s1, 8192, %s32, [#allocation6], 256, 256, 16
    $region9: #{tpu_custom_call.1} parent=1 // pred_fallthru
      _
    // Predicated region
    $region10: #{tpu_custom_call.1} parent=1 // pred_check
      _
    $region11: #{tpu_custom_call.1} parent=1 // pred_check_branch
      %39 = sbr.rel (0) target = $region13
    $region12: #{tpu_custom_call.1} parent=1 // pred_region
      _
    $region13: #{tpu_custom_call.1} parent=1 // pred_fallthru
      _
    // Predicated region
    $region14: #{tpu_custom_call.1} parent=1 // pred_check
      _
    $region15: #{tpu_custom_call.1} parent=1 // pred_check_branch
      %41 = sbr.rel (0) target = $region17
    $region16: #{tpu_custom_call.1} parent=1 // pred_region
      %s43 = ssub.s32 4096, 4096
      %44 = vsyncadd [#allocation6], %s43
      %s45 = sshll.u32 [#allocation7], 4
      %s46 = int_to_ptr.vmem [resolvable:$true] %s45
      %51 = dma.hbm_to_vmem [thread:$0]  %s3, 4096, %s46, [#allocation6], 128, 128, 8
    $region17: #{tpu_custom_call.1} parent=1 // pred_fallthru
      _
    // Predicated region
    $region18: #{tpu_custom_call.1} parent=1 // pred_check
      _
    $region19: #{tpu_custom_call.1} parent=1 // pred_check_branch
      %53 = sbr.rel (0) target = $region21
    $region20: #{tpu_custom_call.1} parent=1 // pred_region
      _
    $region21: #{tpu_custom_call.1} parent=1 // pred_fallthru
      _
    // Predicated region
    $region22: #{tpu_custom_call.1} parent=1 // pred_check
      _
    $region23: #{tpu_custom_call.1} parent=1 // pred_check_branch
      %55 = sbr.rel (0) target = $region25
    $region24: #{tpu_custom_call.1} parent=1 // pred_region
      %s57 = ssub.s32 2048, 2048
      %58 = vsyncadd [#allocation9], %s57
      %s59 = sshll.u32 [#allocation8], 4
      %s60 = int_to_ptr.vmem [resolvable:$true] %s59
      %65 = dma.hbm_to_vmem [thread:$0]  %s5, 2048, %s60, [#allocation9], 128, 128, 8
    $region25: #{tpu_custom_call.1} parent=1 // pred_fallthru
      _
    // Predicated region
    $region26: #{tpu_custom_call.1} parent=1 // pred_check
      _
    $region27: #{tpu_custom_call.1} parent=1 // pred_check_branch
      %67 = sbr.rel (0) target = $region29
    $region28: #{tpu_custom_call.1} parent=1 // pred_region
      _
    $region29: #{tpu_custom_call.1} parent=1 // pred_fallthru
      _
    // Predicated region
    $region30: #{tpu_custom_call.1} parent=1 // pred_check
      _
    $region31: #{tpu_custom_call.1} parent=1 // pred_check_branch
      %69 = sbr.rel (0) target = $region33
    $region32: #{tpu_custom_call.1} parent=1 // pred_region
      %70 = dma.done [#allocation3], 64
    $region33: #{tpu_custom_call.1} parent=1 // pred_fallthru
      _
    // Predicated region
    $region34: #{tpu_custom_call.1} parent=1 // pred_check
      _
    $region35: #{tpu_custom_call.1} parent=1 // pred_check_branch
      %72 = sbr.rel (0) target = $region37
    $region36: #{tpu_custom_call.1} parent=1 // pred_region
      %73 = dma.done [#allocation6], 8192
    $region37: #{tpu_custom_call.1} parent=1 // pred_fallthru
      _
    // Predicated region
    $region38: #{tpu_custom_call.1} parent=1 // pred_check
      _
    $region39: #{tpu_custom_call.1} parent=1 // pred_check_branch
      %75 = sbr.rel (0) target = $region41
    $region40: #{tpu_custom_call.1} parent=1 // pred_region
      %76 = dma.done [#allocation6], 4096
    $region41: #{tpu_custom_call.1} parent=1 // pred_fallthru
      _
    // Predicated region
    $region42: #{tpu_custom_call.1} parent=1 // pred_check
      _
    $region43: #{tpu_custom_call.1} parent=1 // pred_check_branch
      %78 = sbr.rel (0) target = $region45
    $region44: #{tpu_custom_call.1} parent=1 // pred_region
      %79 = dma.done [#allocation9], 2048
    $region45: #{tpu_custom_call.1} parent=1 // pred_fallthru
      _
    %v80 = vld [vmem:[#allocation2] sm:$0xf]
    %v81 = vld [vmem:[#allocation5] sm:$0xff]
    %v82 = vld [vmem:[#allocation5 + $0x8] sm:$0xff]
    %v83 = vld [vmem:[#allocation5 + $0x10] sm:$0xff]
    %v84 = vld [vmem:[#allocation5 + $0x18] sm:$0xff]
    %v85 = vld [vmem:[#allocation5 + $0x20] sm:$0xff]
    %v86 = vld [vmem:[#allocation5 + $0x28] sm:$0xff]
    %v87 = vld [vmem:[#allocation5 + $0x30] sm:$0xff]
    %v88 = vld [vmem:[#allocation5 + $0x38] sm:$0xff]
    %v89 = vld [vmem:[#allocation5 + $0x40] sm:$0xff]
    %v90 = vld [vmem:[#allocation5 + $0x48] sm:$0xff]
    %v91 = vld [vmem:[#allocation5 + $0x50] sm:$0xff]
    %v92 = vld [vmem:[#allocation5 + $0x58] sm:$0xff]
    %v93 = vld [vmem:[#allocation5 + $0x60] sm:$0xff]
    %v94 = vld [vmem:[#allocation5 + $0x68] sm:$0xff]
    %v95 = vld [vmem:[#allocation5 + $0x70] sm:$0xff]
    %v96 = vld [vmem:[#allocation5 + $0x78] sm:$0xff]
    %v97 = vld [vmem:[#allocation5 + $0x80] sm:$0xff]
    %v98 = vld [vmem:[#allocation5 + $0x88] sm:$0xff]
    %v99 = vld [vmem:[#allocation5 + $0x90] sm:$0xff]
    %v100 = vld [vmem:[#allocation5 + $0x98] sm:$0xff]
    %v101 = vld [vmem:[#allocation5 + $0xa0] sm:$0xff]
    %v102 = vld [vmem:[#allocation5 + $0xa8] sm:$0xff]
    %v103 = vld [vmem:[#allocation5 + $0xb0] sm:$0xff]
    %v104 = vld [vmem:[#allocation5 + $0xb8] sm:$0xff]
    %v105 = vld [vmem:[#allocation5 + $0xc0] sm:$0xff]
    %v106 = vld [vmem:[#allocation5 + $0xc8] sm:$0xff]
    %v107 = vld [vmem:[#allocation5 + $0xd0] sm:$0xff]
    %v108 = vld [vmem:[#allocation5 + $0xd8] sm:$0xff]
    %v109 = vld [vmem:[#allocation5 + $0xe0] sm:$0xff]
    %v110 = vld [vmem:[#allocation5 + $0xe8] sm:$0xff]
    %v111 = vld [vmem:[#allocation5 + $0xf0] sm:$0xff]
    %v112 = vld [vmem:[#allocation5 + $0xf8] sm:$0xff]
    %v113 = vld [vmem:[#allocation5 + $0x100] sm:$0xff]
    %v114 = vld [vmem:[#allocation5 + $0x108] sm:$0xff]
    %v115 = vld [vmem:[#allocation5 + $0x110] sm:$0xff]
    %v116 = vld [vmem:[#allocation5 + $0x118] sm:$0xff]
    %v117 = vld [vmem:[#allocation5 + $0x120] sm:$0xff]
    %v118 = vld [vmem:[#allocation5 + $0x128] sm:$0xff]
    %v119 = vld [vmem:[#allocation5 + $0x130] sm:$0xff]
    %v120 = vld [vmem:[#allocation5 + $0x138] sm:$0xff]
    %v121 = vld [vmem:[#allocation5 + $0x140] sm:$0xff]
    %v122 = vld [vmem:[#allocation5 + $0x148] sm:$0xff]
    %v123 = vld [vmem:[#allocation5 + $0x150] sm:$0xff]
    %v124 = vld [vmem:[#allocation5 + $0x158] sm:$0xff]
    %v125 = vld [vmem:[#allocation5 + $0x160] sm:$0xff]
    %v126 = vld [vmem:[#allocation5 + $0x168] sm:$0xff]
    %v127 = vld [vmem:[#allocation5 + $0x170] sm:$0xff]
    %v128 = vld [vmem:[#allocation5 + $0x178] sm:$0xff]
    %v129 = vld [vmem:[#allocation5 + $0x180] sm:$0xff]
    %v130 = vld [vmem:[#allocation5 + $0x188] sm:$0xff]
    %v131 = vld [vmem:[#allocation5 + $0x190] sm:$0xff]
    %v132 = vld [vmem:[#allocation5 + $0x198] sm:$0xff]
    %v133 = vld [vmem:[#allocation5 + $0x1a0] sm:$0xff]
    %v134 = vld [vmem:[#allocation5 + $0x1a8] sm:$0xff]
    %v135 = vld [vmem:[#allocation5 + $0x1b0] sm:$0xff]
    %v136 = vld [vmem:[#allocation5 + $0x1b8] sm:$0xff]
    %v137 = vld [vmem:[#allocation5 + $0x1c0] sm:$0xff]
    %v138 = vld [vmem:[#allocation5 + $0x1c8] sm:$0xff]
    %v139 = vld [vmem:[#allocation5 + $0x1d0] sm:$0xff]
    %v140 = vld [vmem:[#allocation5 + $0x1d8] sm:$0xff]
    %v141 = vld [vmem:[#allocation5 + $0x1e0] sm:$0xff]
    %v142 = vld [vmem:[#allocation5 + $0x1e8] sm:$0xff]
    %v143 = vld [vmem:[#allocation5 + $0x1f0] sm:$0xff]
    %v144 = vld [vmem:[#allocation5 + $0x1f8] sm:$0xff]
    %v145 = vld [vmem:[%s2] sm:$0x3]
    %v147 = vlaneseq
    %v148 = vshrl.u32 %v147, 7
    %v149 = vsub.s32 0, %v148
    %v150 = vrot.slane %v145, %v149
    %v151 = vlaneseq
    %v152 = vshrl.u32 %v151, 7
    %v153 = vsub.s32 1, %v152
    %v154 = vrot.slane %v145, %v153
    %v159 = vunpack.c.l.s4 1983009808
    %v160 = vunpack.c.0.s8 %v159
    %v161 = vlaneseq
    %v162 = vshrl.u32 %v161, 7
    %v163 = vsub.s32 %v160, %v162
    %v164 = vrot.slane %v80, %v163
    %v165 = vcombine.high %v164, %v164
    %168 = vmatprep.subr.mxu0 %v82
    %169 = vmatpush1.msra.mxu0 %v81
    %170 = vmatprep.subr.mxu0 %v84
    %171 = vmatpush1.msra.mxu0 %v83
    %172 = vmatprep.subr.mxu0 %v86
    %173 = vmatpush1.msra.mxu0 %v85
    %174 = vmatprep.subr.mxu0 %v88
    %175 = vmatpush1.msra.mxu0 %v87
    %176 = vmatprep.subr.mxu0 %v90
    %177 = vmatpush1.msra.mxu0 %v89
    %178 = vmatprep.subr.mxu0 %v92
    %179 = vmatpush1.msra.mxu0 %v91
    %180 = vmatprep.subr.mxu0 %v94
    %181 = vmatpush1.msra.mxu0 %v93
    %182 = vmatprep.subr.mxu0 %v96
    %183 = vmatpush1.msra.mxu0 %v95
    %184 = vmatprep.subr.mxu0 %v98
    %185 = vmatpush1.msra.mxu0 %v97
    %186 = vmatprep.subr.mxu0 %v100
    %187 = vmatpush1.msra.mxu0 %v99
    %188 = vmatprep.subr.mxu0 %v102
    %189 = vmatpush1.msra.mxu0 %v101
    %190 = vmatprep.subr.mxu0 %v104
    %191 = vmatpush1.msra.mxu0 %v103
    %192 = vmatprep.subr.mxu0 %v106
    %193 = vmatpush1.msra.mxu0 %v105
    %194 = vmatprep.subr.mxu0 %v108
    %195 = vmatpush1.msra.mxu0 %v107
    %196 = vmatprep.subr.mxu0 %v110
    %197 = vmatpush1.msra.mxu0 %v109
    %198 = vmatprep.subr.mxu0 %v112
    %199 = vmatpush1.msra.mxu0 %v111
    %200 = vmatprep.subr.mxu0 %v114
    %201 = vmatpush1.msra.mxu0 %v113
    %202 = vmatprep.subr.mxu0 %v116
    %203 = vmatpush1.msra.mxu0 %v115
    %204 = vmatprep.subr.mxu0 %v118
    %205 = vmatpush1.msra.mxu0 %v117
    %206 = vmatprep.subr.mxu0 %v120
    %207 = vmatpush1.msra.mxu0 %v119
    %208 = vmatprep.subr.mxu0 %v122
    %209 = vmatpush1.msra.mxu0 %v121
    %210 = vmatprep.subr.mxu0 %v124
    %211 = vmatpush1.msra.mxu0 %v123
    %212 = vmatprep.subr.mxu0 %v126
    %213 = vmatpush1.msra.mxu0 %v125
    %214 = vmatprep.subr.mxu0 %v128
    %215 = vmatpush1.msra.mxu0 %v127
    %216 = vmatprep.subr.mxu0 %v130
    %217 = vmatpush1.msra.mxu0 %v129
    %218 = vmatprep.subr.mxu0 %v132
    %219 = vmatpush1.msra.mxu0 %v131
    %220 = vmatprep.subr.mxu0 %v134
    %221 = vmatpush1.msra.mxu0 %v133
    %222 = vmatprep.subr.mxu0 %v136
    %223 = vmatpush1.msra.mxu0 %v135
    %224 = vmatprep.subr.mxu0 %v138
    %225 = vmatpush1.msra.mxu0 %v137
    %226 = vmatprep.subr.mxu0 %v140
    %227 = vmatpush1.msra.mxu0 %v139
    %228 = vmatprep.subr.mxu0 %v142
    %229 = vmatpush1.msra.mxu0 %v141
    %230 = vmatprep.subr.mxu0 %v144
    %231 = vmatpush1.msra.mxu0 %v143
    %232 = vmatprep.mubr.f32.mxu0 %v165
    %233 = vmatmul.mubr.f32.gmra.mrb[0].mxu0 %v164
    %v234 = vpop.f32.mrb[0].mxu0
    %v235 = vadd.f32 %v150, %v234
    %v236 = vpop.f32.mrb[0].mxu0
    %v237 = vadd.f32 %v154, %v236
    %238 = vdwg.mxu0
    %v239 = vmax.f32 %v235, 0.0
    %v240 = vmax.f32 %v237, 0.0
    %v241 = vld [vmem:[#allocation7] sm:$0xff]
    %v242 = vld [vmem:[#allocation7 + $0x8] sm:$0xff]
    %v243 = vld [vmem:[#allocation7 + $0x10] sm:$0xff]
    %v244 = vld [vmem:[#allocation7 + $0x18] sm:$0xff]
    %v245 = vld [vmem:[#allocation7 + $0x20] sm:$0xff]
    %v246 = vld [vmem:[#allocation7 + $0x28] sm:$0xff]
    %v247 = vld [vmem:[#allocation7 + $0x30] sm:$0xff]
    %v248 = vld [vmem:[#allocation7 + $0x38] sm:$0xff]
    %v249 = vld [vmem:[#allocation7 + $0x40] sm:$0xff]
    %v250 = vld [vmem:[#allocation7 + $0x48] sm:$0xff]
    %v251 = vld [vmem:[#allocation7 + $0x50] sm:$0xff]
    %v252 = vld [vmem:[#allocation7 + $0x58] sm:$0xff]
    %v253 = vld [vmem:[#allocation7 + $0x60] sm:$0xff]
    %v254 = vld [vmem:[#allocation7 + $0x68] sm:$0xff]
    %v255 = vld [vmem:[#allocation7 + $0x70] sm:$0xff]
    %v256 = vld [vmem:[#allocation7 + $0x78] sm:$0xff]
    %v257 = vld [vmem:[#allocation7 + $0x80] sm:$0xff]
    %v258 = vld [vmem:[#allocation7 + $0x88] sm:$0xff]
    %v259 = vld [vmem:[#allocation7 + $0x90] sm:$0xff]
    %v260 = vld [vmem:[#allocation7 + $0x98] sm:$0xff]
    %v261 = vld [vmem:[#allocation7 + $0xa0] sm:$0xff]
    %v262 = vld [vmem:[#allocation7 + $0xa8] sm:$0xff]
    %v263 = vld [vmem:[#allocation7 + $0xb0] sm:$0xff]
    %v264 = vld [vmem:[#allocation7 + $0xb8] sm:$0xff]
    %v265 = vld [vmem:[#allocation7 + $0xc0] sm:$0xff]
    %v266 = vld [vmem:[#allocation7 + $0xc8] sm:$0xff]
    %v267 = vld [vmem:[#allocation7 + $0xd0] sm:$0xff]
    %v268 = vld [vmem:[#allocation7 + $0xd8] sm:$0xff]
    %v269 = vld [vmem:[#allocation7 + $0xe0] sm:$0xff]
    %v270 = vld [vmem:[#allocation7 + $0xe8] sm:$0xff]
    %v271 = vld [vmem:[#allocation7 + $0xf0] sm:$0xff]
    %v272 = vld [vmem:[#allocation7 + $0xf8] sm:$0xff]
    %v273 = vld [vmem:[%s4] sm:$0x1]
    %v275 = vlaneseq
    %v276 = vshrl.u32 %v275, 7
    %v277 = vsub.s32 0, %v276
    %v278 = vrot.slane %v273, %v277
    %280 = vmatprep.subr.mxu0 0.0
    %281 = vmatpush1.msra.mxu0 %v241
    %282 = vmatprep.subr.mxu0 0.0
    %283 = vmatpush1.msra.mxu0 %v242
    %284 = vmatprep.subr.mxu0 0.0
    %285 = vmatpush1.msra.mxu0 %v243
    %286 = vmatprep.subr.mxu0 0.0
    %287 = vmatpush1.msra.mxu0 %v244
    %288 = vmatprep.subr.mxu0 0.0
    %289 = vmatpush1.msra.mxu0 %v245
    %290 = vmatprep.subr.mxu0 0.0
    %291 = vmatpush1.msra.mxu0 %v246
    %292 = vmatprep.subr.mxu0 0.0
    %293 = vmatpush1.msra.mxu0 %v247
    %294 = vmatprep.subr.mxu0 0.0
    %295 = vmatpush1.msra.mxu0 %v248
    %296 = vmatprep.subr.mxu0 0.0
    %297 = vmatpush1.msra.mxu0 %v249
    %298 = vmatprep.subr.mxu0 0.0
    %299 = vmatpush1.msra.mxu0 %v250
    %300 = vmatprep.subr.mxu0 0.0
    %301 = vmatpush1.msra.mxu0 %v251
    %302 = vmatprep.subr.mxu0 0.0
    %303 = vmatpush1.msra.mxu0 %v252
    %304 = vmatprep.subr.mxu0 0.0
    %305 = vmatpush1.msra.mxu0 %v253
    %306 = vmatprep.subr.mxu0 0.0
    %307 = vmatpush1.msra.mxu0 %v254
    %308 = vmatprep.subr.mxu0 0.0
    %309 = vmatpush1.msra.mxu0 %v255
    %310 = vmatprep.subr.mxu0 0.0
    %311 = vmatpush1.msra.mxu0 %v256
    %312 = vmatprep.subr.mxu0 0.0
    %313 = vmatpush1.msra.mxu0 %v257
    %314 = vmatprep.subr.mxu0 0.0
    %315 = vmatpush1.msra.mxu0 %v258
    %316 = vmatprep.subr.mxu0 0.0
    %317 = vmatpush1.msra.mxu0 %v259
    %318 = vmatprep.subr.mxu0 0.0
    %319 = vmatpush1.msra.mxu0 %v260
    %320 = vmatprep.subr.mxu0 0.0
    %321 = vmatpush1.msra.mxu0 %v261
    %322 = vmatprep.subr.mxu0 0.0
    %323 = vmatpush1.msra.mxu0 %v262
    %324 = vmatprep.subr.mxu0 0.0
    %325 = vmatpush1.msra.mxu0 %v263
    %326 = vmatprep.subr.mxu0 0.0
    %327 = vmatpush1.msra.mxu0 %v264
    %328 = vmatprep.subr.mxu0 0.0
    %329 = vmatpush1.msra.mxu0 %v265
    %330 = vmatprep.subr.mxu0 0.0
    %331 = vmatpush1.msra.mxu0 %v266
    %332 = vmatprep.subr.mxu0 0.0
    %333 = vmatpush1.msra.mxu0 %v267
    %334 = vmatprep.subr.mxu0 0.0
    %335 = vmatpush1.msra.mxu0 %v268
    %336 = vmatprep.subr.mxu0 0.0
    %337 = vmatpush1.msra.mxu0 %v269
    %338 = vmatprep.subr.mxu0 0.0
    %339 = vmatpush1.msra.mxu0 %v270
    %340 = vmatprep.subr.mxu0 0.0
    %341 = vmatpush1.msra.mxu0 %v271
    %342 = vmatprep.subr.mxu0 0.0
    %343 = vmatpush1.msra.mxu0 %v272
    %344 = vmatprep.mubr.f32.mxu0 %v240
    %345 = vmatmul.mubr.f32.gmra.mrb[0].mxu0 %v239
    %v346 = vpop.f32.mrb[0].mxu0
    %v347 = vadd.f32 %v278, %v346
    %v348 = vpop.f32.mrb[0].mxu0
    %349 = vdwg.mxu0
    %v350 = vmax.f32 %v347, 0.0
    %v351 = vld [vmem:[#allocation8] sm:$0xff]
    %v352 = vld [vmem:[#allocation8 + $0x8] sm:$0xff]
    %v353 = vld [vmem:[#allocation8 + $0x10] sm:$0xff]
    %v354 = vld [vmem:[#allocation8 + $0x18] sm:$0xff]
    %v355 = vld [vmem:[#allocation8 + $0x20] sm:$0xff]
    %v356 = vld [vmem:[#allocation8 + $0x28] sm:$0xff]
    %v357 = vld [vmem:[#allocation8 + $0x30] sm:$0xff]
    %v358 = vld [vmem:[#allocation8 + $0x38] sm:$0xff]
    %v359 = vld [vmem:[#allocation8 + $0x40] sm:$0xff]
    %v360 = vld [vmem:[#allocation8 + $0x48] sm:$0xff]
    %v361 = vld [vmem:[#allocation8 + $0x50] sm:$0xff]
    %v362 = vld [vmem:[#allocation8 + $0x58] sm:$0xff]
    %v363 = vld [vmem:[#allocation8 + $0x60] sm:$0xff]
    %v364 = vld [vmem:[#allocation8 + $0x68] sm:$0xff]
    %v365 = vld [vmem:[#allocation8 + $0x70] sm:$0xff]
    %v366 = vld [vmem:[#allocation8 + $0x78] sm:$0xff]
    %v367 = vld [vmem:[%s6] sm:$0x1]
    %v369 = vlaneseq
    %v370 = vshrl.u32 %v369, 7
    %v371 = vsub.s32 0, %v370
    %v372 = vrot.slane %v367, %v371
    %374 = vmatprep.subr.mxu0 0.0
    %375 = vmatpush1.msra.mxu0 %v351
    %376 = vmatprep.subr.mxu0 0.0
    %377 = vmatpush1.msra.mxu0 %v352
    %378 = vmatprep.subr.mxu0 0.0
    %379 = vmatpush1.msra.mxu0 %v353
    %380 = vmatprep.subr.mxu0 0.0
    %381 = vmatpush1.msra.mxu0 %v354
    %382 = vmatprep.subr.mxu0 0.0
    %383 = vmatpush1.msra.mxu0 %v355
    %384 = vmatprep.subr.mxu0 0.0
    %385 = vmatpush1.msra.mxu0 %v356
    %386 = vmatprep.subr.mxu0 0.0
    %387 = vmatpush1.msra.mxu0 %v357
    %388 = vmatprep.subr.mxu0 0.0
    %389 = vmatpush1.msra.mxu0 %v358
    %390 = vmatprep.subr.mxu0 0.0
    %391 = vmatpush1.msra.mxu0 %v359
    %392 = vmatprep.subr.mxu0 0.0
    %393 = vmatpush1.msra.mxu0 %v360
    %394 = vmatprep.subr.mxu0 0.0
    %395 = vmatpush1.msra.mxu0 %v361
    %396 = vmatprep.subr.mxu0 0.0
    %397 = vmatpush1.msra.mxu0 %v362
    %398 = vmatprep.subr.mxu0 0.0
    %399 = vmatpush1.msra.mxu0 %v363
    %400 = vmatprep.subr.mxu0 0.0
    %401 = vmatpush1.msra.mxu0 %v364
    %402 = vmatprep.subr.mxu0 0.0
    %403 = vmatpush1.msra.mxu0 %v365
    %404 = vmatprep.subr.mxu0 0.0
    %405 = vmatpush1.msra.mxu0 %v366
    %406 = vmatprep.subr.mxu0 0.0
    %407 = vmatpush1.msra.mxu0 0.0
    %408 = vmatprep.subr.mxu0 0.0
    %409 = vmatpush1.msra.mxu0 0.0
    %410 = vmatprep.subr.mxu0 0.0
    %411 = vmatpush1.msra.mxu0 0.0
    %412 = vmatprep.subr.mxu0 0.0
    %413 = vmatpush1.msra.mxu0 0.0
    %414 = vmatprep.subr.mxu0 0.0
    %415 = vmatpush1.msra.mxu0 0.0
    %416 = vmatprep.subr.mxu0 0.0
    %417 = vmatpush1.msra.mxu0 0.0
    %418 = vmatprep.subr.mxu0 0.0
    %419 = vmatpush1.msra.mxu0 0.0
    %420 = vmatprep.subr.mxu0 0.0
    %421 = vmatpush1.msra.mxu0 0.0
    %422 = vmatprep.subr.mxu0 0.0
    %423 = vmatpush1.msra.mxu0 0.0
    %424 = vmatprep.subr.mxu0 0.0
    %425 = vmatpush1.msra.mxu0 0.0
    %426 = vmatprep.subr.mxu0 0.0
    %427 = vmatpush1.msra.mxu0 0.0
    %428 = vmatprep.subr.mxu0 0.0
    %429 = vmatpush1.msra.mxu0 0.0
    %430 = vmatprep.subr.mxu0 0.0
    %431 = vmatpush1.msra.mxu0 0.0
    %432 = vmatprep.subr.mxu0 0.0
    %433 = vmatpush1.msra.mxu0 0.0
    %434 = vmatprep.subr.mxu0 0.0
    %435 = vmatpush1.msra.mxu0 0.0
    %436 = vmatprep.subr.mxu0 0.0
    %437 = vmatpush1.msra.mxu0 0.0
    %438 = vmatprep.mubr.f32.mxu0 0.0
    %439 = vmatmul.mubr.f32.gmra.mrb[0].mxu0 %v350
    %v440 = vpop.f32.mrb[0].mxu0
    %v441 = vadd.f32 %v372, %v440
    %v442 = vpop.f32.mrb[0].mxu0
    %443 = vdwg.mxu0
    %v444 = vmax.f32 %v441, 0.0
    %v445 = vlaneseq
    %v446 = vand.u32 %v445, 127
    %vm447 = vcmp.lt.s32.totalorder %v446, 56
    %v448 = vsel %vm447, %v444, -inf
    %vm449 = vcmask 1041408
    %v450 = vsel %vm449, %v448, -inf
    %451 = vmax.xlane.f32.xlu0 %v450
    %v452 = vpop.xlane.xlu0 %451
    %v453 = vsub.f32 %v444, %v452
    %v454 = vmul.f32 %v453, 1.442695
    %v455 = vpow.pop %v454
    %v456 = vsel %vm447, %v455, 0.0
    %v457 = vsel %vm449, %v456, 0.0
    %458 = vadd.xlane.f32.xlu0 %v457
    %v459 = vpop.xlane.xlu0 %458
    %v460 = vrcp.pop %v459
    %v461 = vmul.f32 %v456, %v460
    %vm462 = vcmp.eq.s32.totalorder %v446, 56
    %v463 = vsel %vm462, %v444, %v461
    %464 = vst [vmem:[#allocation10] sm:$0x3] %v463
    // Predicated region
    $region46: #{tpu_custom_call.1} parent=1 // pred_check
      _
    $region47: #{tpu_custom_call.1} parent=1 // pred_check_branch
      %466 = sbr.rel (0) target = $region49
    $region48: #{tpu_custom_call.1} parent=1 // pred_region
      %s468 = ssub.s32 32, 32
      %469 = vsyncadd [#allocation4], %s468
      %s471 = sshll.u32 [#allocation10], 4
      %s472 = int_to_ptr.vmem [resolvable:$true] %s471
      %474 = dma.vmem_to_hbm [thread:$0]  %s472, 32, %s7, [#allocation4]
    $region49: #{tpu_custom_call.1} parent=1 // pred_fallthru
      _
    // Predicated region
    $region50: #{tpu_custom_call.1} parent=1 // pred_check
      _
    $region51: #{tpu_custom_call.1} parent=1 // pred_check_branch
      %476 = sbr.rel (0) target = $region53
    $region52: #{tpu_custom_call.1} parent=1 // pred_region
      %477 = dma.done [#allocation4], 32
    $region53: #{tpu_custom_call.1} parent=1 // pred_fallthru
      _
    %478 = vsyncpa [#allocation3], 1
    %479 = vsyncpa [#allocation6], 1
    %480 = vsyncpa [#allocation9], 1
    %481 = vsyncpa [#allocation4], 1

</llo_original>
